<compile_context>
chip_gen: v5e
topology: v5e:2x2
jax: 0.10.0
libtpu: 0.0.40
codegen_flags: <defaults>
</compile_context>

<pallas_src>
import numpy as np
import jax
import jax.numpy as jnp
from jax.experimental import pallas as pl
from jax.experimental.pallas import tpu as pltpu

LETTER_DIM = 8
NUM_POS = 5
MLP_HIDDEN = 256
GUESS_FLAT = NUM_POS * LETTER_DIM                  # 40
COMBINED_DIM = 2 * GUESS_FLAT + 2 * LETTER_DIM     # 96  (torch total_dim)
BIAS_ROW = COMBINED_DIM                            # 96  (ones row -> folded b1)
K_PAD = 128                                        # lane-aligned contraction dim


def _round_up(x, m):
    return (x + m - 1) // m * m


# ----------------------------- Pallas kernel --------------------------------

def _wordle_mlp_kernel(xt_ref, w1t_ref, w2_ref, b2_ref, out_ref):
    """One batch tile, transposed orientation (batch on lanes throughout).

    xt : (128, tb)  bf16   activation tile, x^T (row 96 is the ones/bias row)
    w1t: (256, 128) bf16   W1'^T, VMEM-resident across grid steps (b1 folded in)
    w2 : (1, 256)   bf16   second-layer weights as a row
    b2 : (1, 1)     f32    scalar bias in SMEM
    out: (1, tb)    f32    lane-dense output row
    """
    h = jnp.dot(w1t_ref[...], xt_ref[...],
                preferred_element_type=jnp.float32)           # (256, tb)
    h = jnp.maximum(h, 0.0).astype(jnp.bfloat16)              # ReLU (b1 already in matmul)
    out = jnp.dot(w2_ref[...], h,
                  preferred_element_type=jnp.float32)         # (1, tb)
    out_ref[...] = out + b2_ref[0, 0]


# ----------------------------- parameters -----------------------------------

def init_params(key):
    k1, k2, k3, k4, k5, k6 = jax.random.split(key, 6)
    emb26 = jax.random.normal(k1, (26, LETTER_DIM), jnp.float32)           # guess_embedding
    emb27 = jax.random.normal(k2, (27, LETTER_DIM), jnp.float32)           # constraint_embedding
    w1 = jax.random.normal(k3, (COMBINED_DIM, MLP_HIDDEN), jnp.float32) * 0.1
    b1 = jax.random.normal(k4, (MLP_HIDDEN,), jnp.float32) * 0.1
    w2 = jax.random.normal(k5, (MLP_HIDDEN, 1), jnp.float32) * 0.1
    b2 = jax.random.normal(k6, (1,), jnp.float32) * 0.1
    return emb26, emb27, w1, b1, w2, b2


def fuse_params(params):
    """Build W1'^T (256, 128) with w1^T in cols 0:96, b1 in col 96, zeros after."""
    _emb26, _emb27, w1, b1, w2, b2 = params
    w1t = jnp.zeros((MLP_HIDDEN, K_PAD), jnp.float32)
    w1t = w1t.at[:, :COMBINED_DIM].set(w1.T)
    w1t = w1t.at[:, BIAS_ROW].set(b1)
    return (w1t.astype(jnp.bfloat16),
            w2.reshape(1, MLP_HIDDEN).astype(jnp.bfloat16),     # (256,1) -> (1,256)
            b2.reshape(1, 1).astype(jnp.float32))


# ----------------------------- plain-JAX glue --------------------------------

def _ragged_mean_embeddings(list_of_lists, emb26):
    """Vectorized torch `aggregate_set`: padded gather + masked mean.

    Duplicates are included in the mean; empty sets give exact zeros.
    Host-side work is only building small numpy index/mask arrays.
    """
    B = len(list_of_lists)
    lens = np.array([len(s) for s in list_of_lists], dtype=np.int32)
    lmax = max(int(lens.max()) if B else 0, 1)
    idx = np.zeros((B, lmax), dtype=np.int32)
    msk = np.zeros((B, lmax), dtype=np.float32)
    for i, s in enumerate(list_of_lists):
        if len(s):
            idx[i, :len(s)] = np.asarray(s, dtype=np.int32)
            msk[i, :len(s)] = 1.0
    gathered = emb26[jnp.asarray(idx)]                                    # (B, Lmax, 8)
    summed = jnp.einsum('bld,bl->bd', gathered, jnp.asarray(msk))         # (B, 8)
    denom = jnp.maximum(jnp.asarray(lens, np.float32), 1.0)[:, None]
    return summed / denom


def build_xt(guess_indices, constraint_indices, presence_list, absent_list,
             emb26, emb27, b_pad):
    """Build x^T (128, b_pad) bf16 in one shot: gathers + set aggregation (f32),
    feature-major transpose, ones row for folded b1, zero rows + batch pad."""
    B = guess_indices.shape[0]
    guess_flat = emb26[guess_indices].reshape(B, GUESS_FLAT)              # (B, 40)
    constr_flat = emb27[constraint_indices].reshape(B, GUESS_FLAT)        # (B, 40)
    pres_agg = _ragged_mean_embeddings(presence_list, emb26)              # (B, 8)
    abs_agg = _ragged_mean_embeddings(absent_list, emb26)                 # (B, 8)
    x96 = jnp.concatenate([guess_flat, constr_flat, pres_agg, abs_agg], axis=1)
    xt = jnp.concatenate([
        x96.T,                                                            # (96, B)
        jnp.ones((1, B), jnp.float32),                                    # bias/ones row
        jnp.zeros((K_PAD - COMBINED_DIM - 1, B), jnp.float32),            # 31 zero rows
    ], axis=0).astype(jnp.bfloat16)                                       # (128, B)
    return jnp.pad(xt, ((0, 0), (0, b_pad - B)))                          # (128, b_pad)


# ----------------------------- forward ---------------------------------------

def _compute_tiling(B, block_rows):
    """Batch tile sized for <=~127 rows of pad per block and >=2 grid steps
    whenever the 128-padded batch allows (keeps both v7x TensorCores busy)."""
    b_pad128 = _round_up(max(B, 1), 128)
    num_blocks = pl.cdiv(b_pad128, block_rows)
    if b_pad128 >= 256:
        num_blocks = max(num_blocks, 2)
    tb = _round_up(pl.cdiv(b_pad128, num_blocks), 128)
    b_pad = tb * num_blocks
    return tb, num_blocks, b_pad


def wordle_forward_pallas(guess_indices, constraint_indices, presence_list,
                          absent_list, emb26, emb27, fused, *, block_rows=4096):
    w1t, w2row, b2 = fused
    B = guess_indices.shape[0]
    tb, num_blocks, b_pad = _compute_tiling(B, block_rows)

    xt = build_xt(guess_indices, constraint_indices, presence_list, absent_list,
                  emb26, emb27, b_pad)                                    # (128, b_pad) bf16

    flops = 2 * b_pad * MLP_HIDDEN * (K_PAD + 1)
    bytes_accessed = (xt.size * 2 + w1t.size * 2 + w2row.size * 2 + 4 + b_pad * 4)

    if num_blocks > 1:
        x_spec = pl.BlockSpec((K_PAD, tb), lambda i: (0, i),
                              pipeline_mode=pl.Buffered(3))               # hide DMA jitter
    else:
        x_spec = pl.BlockSpec((K_PAD, tb), lambda i: (0, i))

    out_row = pl.pallas_call(
        _wordle_mlp_kernel,
        out_shape=jax.ShapeDtypeStruct((1, b_pad), jnp.float32),
        grid=(num_blocks,),
        in_specs=[
            x_spec,                                                       # streamed x^T tiles
            pl.BlockSpec((MLP_HIDDEN, K_PAD), lambda i: (0, 0)),          # W1'^T resident
            pl.BlockSpec((1, MLP_HIDDEN), lambda i: (0, 0)),              # w2 row resident
            pl.BlockSpec(memory_space=pltpu.MemorySpace.SMEM),            # b2 scalar
        ],
        out_specs=pl.BlockSpec((1, tb), lambda i: (0, i)),                # lane-dense output row
        compiler_params=pltpu.CompilerParams(
            dimension_semantics=("parallel",),                            # shard batch over TCs
            vmem_limit_bytes=32 * 1024 * 1024),
        cost_estimate=pl.CostEstimate(
            flops=flops, transcendentals=0, bytes_accessed=bytes_accessed),
    )(xt, w1t, w2row, b2)

    return out_row[0, :B].reshape(B, 1)


# ----------------------------- reference -------------------------------------

def reference_forward(guess_indices, constraint_indices, presence_list, absent_list,
                      params):
    """f32, unfused reference mirroring the PyTorch module."""
    emb26, emb27, w1, b1, w2, b2 = params
    B = guess_indices.shape[0]
    guess_flat = emb26[guess_indices].reshape(B, GUESS_FLAT)
    constr_flat = emb27[constraint_indices].reshape(B, GUESS_FLAT)

    def agg(letters):
        if len(letters) == 0:
            return jnp.zeros((LETTER_DIM,), jnp.float32)
        return emb26[jnp.asarray(letters, jnp.int32)].mean(axis=0)

    pres = jnp.stack([agg(s) for s in presence_list])
    absn = jnp.stack([agg(s) for s in absent_list])
    combined = jnp.concatenate([guess_flat, constr_flat, pres, absn], axis=1)
    h = jnp.maximum(combined @ w1 + b1, 0.0)
    return h @ w2 + b2


# ----------------------------- test -----------------------------------------

if __name__ == "__main__":
    key = jax.random.PRNGKey(0)
    pkey, ikey, ckey = jax.random.split(key, 3)
    params = init_params(pkey)
    emb26, emb27 = params[0], params[1]
    fused = fuse_params(params)

    # --- small deterministic test (single grid step) ---
    B = 8
    guess_indices = jax.random.randint(ikey, (B, NUM_POS), 0, 26)
    constraint_indices = jax.random.randint(ckey, (B, NUM_POS), 0, 27)
    presence_list = [[0, 4], [], [7, 11, 19], [2], [], [5, 5, 8], [25], [1, 3, 6, 9]]
    absent_list = [[], [12, 13], [20], [], [21, 22, 23], [], [0, 1], [17]]

    out = wordle_forward_pallas(guess_indices, constraint_indices, presence_list,
                                absent_list, emb26, emb27, fused)
    out = jax.block_until_ready(out)
    ref = reference_forward(guess_indices, constraint_indices, presence_list,
                            absent_list, params)
    assert out.shape == (B, 1)
    # bf16 operands (f32 MXU accumulate) -> loosened tolerance vs f32 reference.
    assert jnp.allclose(out, ref, atol=5e-2, rtol=5e-2), (out, ref)

    # --- multi-block test (2 grid steps: megacore sharding + Buffered(3)) ---
    B2 = 200
    rng = np.random.default_rng(0)
    g2 = jnp.asarray(rng.integers(0, 26, size=(B2, NUM_POS)), jnp.int32)
    c2 = jnp.asarray(rng.integers(0, 27, size=(B2, NUM_POS)), jnp.int32)
    pres2 = [[int(v) for v in rng.integers(0, 26, size=int(rng.integers(0, 5)))]
             for _ in range(B2)]
    abs2 = [[int(v) for v in rng.integers(0, 26, size=int(rng.integers(0, 6)))]
            for _ in range(B2)]

    out2 = wordle_forward_pallas(g2, c2, pres2, abs2, emb26, emb27, fused,
                                 block_rows=128)
    out2 = jax.block_until_ready(out2)
    ref2 = reference_forward(g2, c2, pres2, abs2, params)
    assert out2.shape == (B2, 1)
    assert jnp.allclose(out2, ref2, atol=5e-2, rtol=5e-2), \
        float(jnp.max(jnp.abs(out2 - ref2)))

    print("KERNEL_OK")
</pallas_src>

<mosaic_0001>
module attributes {stable_mosaic.version = 11 : i64} {
  func.func @_wordle_mlp_kernel(%arg0: i32, %arg1: memref<128x128xbf16, #tpu.memory_space<vmem>>, %arg2: memref<256x128xbf16, #tpu.memory_space<vmem>>, %arg3: memref<1x256xbf16, #tpu.memory_space<vmem>>, %arg4: memref<1x1xf32, #tpu.memory_space<smem>>, %arg5: memref<1x128xf32, #tpu.memory_space<vmem>>) attributes {dimension_semantics = [#tpu.dimension_semantics<parallel>], iteration_bounds = array<i64: 1>, scalar_prefetch = 0 : i64, scratch_operands = 0 : i64, tpu.core_type = #tpu.core_type<tc>, window_params = [{transform_indices = @transform_0, window_bounds = array<i64: 128, 128>}, {pipeline_mode = #tpu.pipeline_mode<synchronous>, transform_indices = @transform_1, window_bounds = array<i64: 256, 128>}, {pipeline_mode = #tpu.pipeline_mode<synchronous>, transform_indices = @transform_2, window_bounds = array<i64: 1, 256>}, {transform_indices = @transform_3, window_bounds = array<i64: 1, 1>}, {transform_indices = @transform_4, window_bounds = array<i64: 1, 128>}]} {
    %c0 = arith.constant 0 : index
    %c0_0 = arith.constant 0 : index
    %0 = vector.load %arg2[%c0, %c0_0] : memref<256x128xbf16, #tpu.memory_space<vmem>>, vector<256x128xbf16>
    %c0_1 = arith.constant 0 : index
    %c0_2 = arith.constant 0 : index
    %1 = vector.load %arg1[%c0_1, %c0_2] : memref<128x128xbf16, #tpu.memory_space<vmem>>, vector<128x128xbf16>
    %cst = arith.constant dense<0.000000e+00> : vector<256x128xf32>
    %2 = tpu.matmul %0, %1, %cst {dimension_numbers = #tpu.dot_dimension_numbers<[1], [0], [0], [1], [0, 0, 1, 1], [], []>} : vector<256x128xbf16>, vector<128x128xbf16>, vector<256x128xf32> -> vector<256x128xf32>
    %cst_3 = arith.constant 0.000000e+00 : f32
    %3 = vector.broadcast %cst_3 : f32 to vector<256x128xf32>
    %4 = arith.maximumf %2, %3 : vector<256x128xf32>
    %5 = arith.truncf %4 : vector<256x128xf32> to vector<256x128xbf16>
    %c0_4 = arith.constant 0 : index
    %c0_5 = arith.constant 0 : index
    %6 = vector.load %arg3[%c0_4, %c0_5] : memref<1x256xbf16, #tpu.memory_space<vmem>>, vector<1x256xbf16>
    %cst_6 = arith.constant dense<0.000000e+00> : vector<1x128xf32>
    %7 = tpu.matmul %6, %5, %cst_6 {dimension_numbers = #tpu.dot_dimension_numbers<[1], [0], [0], [1], [0, 0, 1, 1], [], []>} : vector<1x256xbf16>, vector<256x128xbf16>, vector<1x128xf32> -> vector<1x128xf32>
    %c0_7 = arith.constant 0 : index
    %c0_8 = arith.constant 0 : index
    %8 = memref.load %arg4[%c0_7, %c0_8] : memref<1x1xf32, #tpu.memory_space<smem>>
    %9 = vector.broadcast %8 : f32 to vector<1x128xf32>
    %10 = arith.addf %7, %9 : vector<1x128xf32>
    %c0_9 = arith.constant 0 : index
    %c0_10 = arith.constant 0 : index
    %11 = vector.load %arg5[%c0_9, %c0_10] : memref<1x128xf32, #tpu.memory_space<vmem>>, vector<1x128xf32>
    tpu.vector_store %arg5[%c0_9, %c0_10], %10 {strides = array<i32>} : memref<1x128xf32, #tpu.memory_space<vmem>>, vector<1x128xf32>,
    return
  }
  func.func @transform_0(%arg0: i32) -> (i32, i32) {
    %c0_i32 = arith.constant 0 : i32
    %c0_i32_0 = arith.constant 0 : i32
    return %c0_i32, %arg0 : i32, i32
  }
  func.func @transform_1(%arg0: i32) -> (i32, i32) {
    %c0_i32 = arith.constant 0 : i32
    %c0_i32_0 = arith.constant 0 : i32
    %c0_i32_1 = arith.constant 0 : i32
    return %c0_i32, %c0_i32_0 : i32, i32
  }
  func.func @transform_2(%arg0: i32) -> (i32, i32) {
    %c0_i32 = arith.constant 0 : i32
    %c0_i32_0 = arith.constant 0 : i32
    %c0_i32_1 = arith.constant 0 : i32
    return %c0_i32, %c0_i32_0 : i32, i32
  }
  func.func @transform_3(%arg0: i32) -> (i32, i32) {
    %c0_i32 = arith.constant 0 : i32
    %c0_i32_0 = arith.constant 0 : i32
    %c0_i32_1 = arith.constant 0 : i32
    return %c0_i32, %c0_i32_0 : i32, i32
  }
  func.func @transform_4(%arg0: i32) -> (i32, i32) {
    %c0_i32 = arith.constant 0 : i32
    %c0_i32_0 = arith.constant 0 : i32
    return %c0_i32, %arg0 : i32, i32
  }
}

</mosaic_0001>

<llo_original>
// kernel: tpu_custom_call.1
$region0: #{tpu_custom_call.1}
  #allocation0 [shape = 'u32[]', space=smem, size = 0x4, offset = 0x4, fixed_abs, tag = 'smem constant byte address 0x4 - core index']
  #allocation1 [shape = 'u32[72,128]{1,0:T(1,128)}', space=vmem, size = 0x9000, scoped, tag = 'internal scratch']
  #allocation2 [shape = 'f32[1,1]{1,0:T(1,128)S(6)}', space=smem, size = 0x200, scoped, tag = 'scoped memory for tpu_custom_call.1']
  %s0 = inlined_call_operand.hbm [shape: bf16[128,128], index: 0, kind: input, shape index: {}]
  %s1 = inlined_call_operand.hbm [shape: bf16[256,128], index: 1, kind: input, shape index: {}]
  %s2 = inlined_call_operand.vmem [shape: bf16[1,256], index: 2, kind: input, shape index: {}]
  %s3 = inlined_call_operand.<no memory space> [shape: f32[1,1], index: 3, kind: input, shape index: {}]
  %s4 = inlined_call_operand.hbm [shape: f32[1,128], index: 4, kind: output, shape index: {}]
  %s5 = sld [smem:[#allocation0]]
  $region34: #{tpu_custom_call.1} parent=0
    _
  %s7 = ssub.s32 1, %s5
  %s8 = scalar_select 0, %s7, %s5
  %9 = sst [smem:[#allocation2]] %s3
  $region1: #{tpu_custom_call.1} parent=0
    #allocation3 [shape = 'u8[32768]{0}', space=vmem, size = 0x8000, scoped, tag = 'input window, operand 0, single buffered']
    #allocation4 [shape = 's32[1]{0}', space=sflag, size = 0x4, scoped, tag = 'scoped memory for tpu_custom_call.1']
    #allocation5 [shape = 's32[1]{0}', space=sflag, size = 0x4, scoped, tag = 'scoped memory for tpu_custom_call.1']
    #allocation6 [shape = 'u8[65536]{0}', space=vmem, size = 0x10000, scoped, tag = 'input window, operand 1, single buffered']
    #allocation7 [shape = 's32[1]{0}', space=sflag, size = 0x4, scoped, tag = 'scoped memory for tpu_custom_call.1']
    #allocation8 [shape = 'u8[512]{0}', space=vmem, size = 0x400, scoped, tag = 'output window, operand 0, single buffered']
    %10 = vsyncpa [#allocation4], 0
    %11 = vsyncpa [#allocation7], 0
    %12 = vsyncpa [#allocation5], 0
    // Predicated region
    $region2: #{tpu_custom_call.1} parent=1 // pred_check
      _
    $region3: #{tpu_custom_call.1} parent=1 // pred_check_branch
      %14 = sbr.rel (0) target = $region5
    $region4: #{tpu_custom_call.1} parent=1 // pred_region
      %16 = vsyncadd [#allocation4], 0
      %s17 = sshll.u32 %s0, 4
      %s18 = int_to_ptr.hbm [resolvable:$true] %s17
      %s19 = sshll.u32 [#allocation3], 4
      %s20 = int_to_ptr.vmem [resolvable:$true] %s19
      %25 = dma.hbm_to_vmem [thread:$0]  %s18, 1024, %s20, [#allocation4], 64, 64, 4
    $region5: #{tpu_custom_call.1} parent=1 // pred_fallthru
      _
    // Predicated region
    $region6: #{tpu_custom_call.1} parent=1 // pred_check
      _
    $region7: #{tpu_custom_call.1} parent=1 // pred_check_branch
      %27 = sbr.rel (0) target = $region9
    $region8: #{tpu_custom_call.1} parent=1 // pred_region
      %29 = vsyncadd [#allocation7], 0
      %s30 = sshll.u32 %s1, 4
      %s31 = int_to_ptr.hbm [resolvable:$true] %s30
      %s32 = sshll.u32 [#allocation6], 4
      %s33 = int_to_ptr.vmem [resolvable:$true] %s32
      %38 = dma.hbm_to_vmem [thread:$0]  %s31, 2048, %s33, [#allocation7], 64, 64, 4
    $region9: #{tpu_custom_call.1} parent=1 // pred_fallthru
      _
    // Predicated region
    $region10: #{tpu_custom_call.1} parent=1 // pred_check
      _
    $region11: #{tpu_custom_call.1} parent=1 // pred_check_branch
      %40 = sbr.rel (0) target = $region13
    $region12: #{tpu_custom_call.1} parent=1 // pred_region
      _
    $region13: #{tpu_custom_call.1} parent=1 // pred_fallthru
      _
    // Predicated region
    $region14: #{tpu_custom_call.1} parent=1 // pred_check
      _
    $region15: #{tpu_custom_call.1} parent=1 // pred_check_branch
      %42 = sbr.rel (0) target = $region17
    $region16: #{tpu_custom_call.1} parent=1 // pred_region
      _
    $region17: #{tpu_custom_call.1} parent=1 // pred_fallthru
      _
    // Predicated region
    $region18: #{tpu_custom_call.1} parent=1 // pred_check
      _
    $region19: #{tpu_custom_call.1} parent=1 // pred_check_branch
      %44 = sbr.rel (0) target = $region21
    $region20: #{tpu_custom_call.1} parent=1 // pred_region
      %46 = dma.done [#allocation4], 1024
    $region21: #{tpu_custom_call.1} parent=1 // pred_fallthru
      _
    // Predicated region
    $region22: #{tpu_custom_call.1} parent=1 // pred_check
      _
    $region23: #{tpu_custom_call.1} parent=1 // pred_check_branch
      %48 = sbr.rel (0) target = $region25
    $region24: #{tpu_custom_call.1} parent=1 // pred_region
      %50 = dma.done [#allocation7], 2048
    $region25: #{tpu_custom_call.1} parent=1 // pred_fallthru
      _
    %v51 = vld [vmem:[#allocation6] sm:$0xf]
    %v52 = vld [vmem:[#allocation6 + $0x4] sm:$0xf]
    %v53 = vld [vmem:[#allocation6 + $0x8] sm:$0xf]
    %v54 = vld [vmem:[#allocation6 + $0xc] sm:$0xf]
    %v55 = vld [vmem:[#allocation6 + $0x10] sm:$0xf]
    %v56 = vld [vmem:[#allocation6 + $0x14] sm:$0xf]
    %v57 = vld [vmem:[#allocation6 + $0x18] sm:$0xf]
    %v58 = vld [vmem:[#allocation6 + $0x1c] sm:$0xf]
    %v59 = vld [vmem:[#allocation6 + $0x20] sm:$0xf]
    %v60 = vld [vmem:[#allocation6 + $0x24] sm:$0xf]
    %v61 = vld [vmem:[#allocation6 + $0x28] sm:$0xf]
    %v62 = vld [vmem:[#allocation6 + $0x2c] sm:$0xf]
    %v63 = vld [vmem:[#allocation6 + $0x30] sm:$0xf]
    %v64 = vld [vmem:[#allocation6 + $0x34] sm:$0xf]
    %v65 = vld [vmem:[#allocation6 + $0x38] sm:$0xf]
    %v66 = vld [vmem:[#allocation6 + $0x3c] sm:$0xf]
    %v67 = vld [vmem:[#allocation6 + $0x40] sm:$0xf]
    %v68 = vld [vmem:[#allocation6 + $0x44] sm:$0xf]
    %v69 = vld [vmem:[#allocation6 + $0x48] sm:$0xf]
    %v70 = vld [vmem:[#allocation6 + $0x4c] sm:$0xf]
    %v71 = vld [vmem:[#allocation6 + $0x50] sm:$0xf]
    %v72 = vld [vmem:[#allocation6 + $0x54] sm:$0xf]
    %v73 = vld [vmem:[#allocation6 + $0x58] sm:$0xf]
    %v74 = vld [vmem:[#allocation6 + $0x5c] sm:$0xf]
    %v75 = vld [vmem:[#allocation6 + $0x60] sm:$0xf]
    %v76 = vld [vmem:[#allocation6 + $0x64] sm:$0xf]
    %v77 = vld [vmem:[#allocation6 + $0x68] sm:$0xf]
    %v78 = vld [vmem:[#allocation6 + $0x6c] sm:$0xf]
    %v79 = vld [vmem:[#allocation6 + $0x70] sm:$0xf]
    %v80 = vld [vmem:[#allocation6 + $0x74] sm:$0xf]
    %v81 = vld [vmem:[#allocation6 + $0x78] sm:$0xf]
    %v82 = vld [vmem:[#allocation6 + $0x7c] sm:$0xf]
    %v83 = vld [vmem:[#allocation3] sm:$0xf]
    %v84 = vld [vmem:[#allocation3 + $0x4] sm:$0xf]
    %v85 = vld [vmem:[#allocation3 + $0x8] sm:$0xf]
    %v86 = vld [vmem:[#allocation3 + $0xc] sm:$0xf]
    %v87 = vld [vmem:[#allocation3 + $0x10] sm:$0xf]
    %v88 = vld [vmem:[#allocation3 + $0x14] sm:$0xf]
    %v89 = vld [vmem:[#allocation3 + $0x18] sm:$0xf]
    %v90 = vld [vmem:[#allocation3 + $0x1c] sm:$0xf]
    %v91 = vld [vmem:[#allocation3 + $0x20] sm:$0xf]
    %v92 = vld [vmem:[#allocation3 + $0x24] sm:$0xf]
    %v93 = vld [vmem:[#allocation3 + $0x28] sm:$0xf]
    %v94 = vld [vmem:[#allocation3 + $0x2c] sm:$0xf]
    %v95 = vld [vmem:[#allocation3 + $0x30] sm:$0xf]
    %v96 = vld [vmem:[#allocation3 + $0x34] sm:$0xf]
    %v97 = vld [vmem:[#allocation3 + $0x38] sm:$0xf]
    %v98 = vld [vmem:[#allocation3 + $0x3c] sm:$0xf]
    %v131 = vunpack.c.l.b16 %v51
    %v132 = vunpack.c.l.b16 %v52
    %v133 = vunpack.c.l.b16 %v53
    %v134 = vunpack.c.l.b16 %v54
    %v135 = vunpack.c.l.b16 %v55
    %v136 = vunpack.c.l.b16 %v56
    %v137 = vunpack.c.l.b16 %v57
    %v138 = vunpack.c.l.b16 %v58
    %v139 = vunpack.c.l.b16 %v59
    %v140 = vunpack.c.l.b16 %v60
    %v141 = vunpack.c.l.b16 %v61
    %v142 = vunpack.c.l.b16 %v62
    %v143 = vunpack.c.l.b16 %v63
    %v144 = vunpack.c.l.b16 %v64
    %v145 = vunpack.c.l.b16 %v65
    %v146 = vunpack.c.l.b16 %v66
    %v147 = vunpack.c.l.b16 %v67
    %v148 = vunpack.c.l.b16 %v68
    %v149 = vunpack.c.l.b16 %v69
    %v150 = vunpack.c.l.b16 %v70
    %v151 = vunpack.c.l.b16 %v71
    %v152 = vunpack.c.l.b16 %v72
    %v153 = vunpack.c.l.b16 %v73
    %v154 = vunpack.c.l.b16 %v74
    %v155 = vunpack.c.l.b16 %v75
    %v156 = vunpack.c.l.b16 %v76
    %v157 = vunpack.c.l.b16 %v77
    %v158 = vunpack.c.l.b16 %v78
    %v159 = vunpack.c.l.b16 %v79
    %v160 = vunpack.c.l.b16 %v80
    %v161 = vunpack.c.l.b16 %v81
    %v162 = vunpack.c.l.b16 %v82
    %v163 = vpack.c.b16 %v132, %v131
    %v164 = vpack.c.b16 %v134, %v133
    %v165 = vpack.c.b16 %v136, %v135
    %v166 = vpack.c.b16 %v138, %v137
    %v167 = vpack.c.b16 %v140, %v139
    %v168 = vpack.c.b16 %v142, %v141
    %v169 = vpack.c.b16 %v144, %v143
    %v170 = vpack.c.b16 %v146, %v145
    %v171 = vpack.c.b16 %v148, %v147
    %v172 = vpack.c.b16 %v150, %v149
    %v173 = vpack.c.b16 %v152, %v151
    %v174 = vpack.c.b16 %v154, %v153
    %v175 = vpack.c.b16 %v156, %v155
    %v176 = vpack.c.b16 %v158, %v157
    %v177 = vpack.c.b16 %v160, %v159
    %v178 = vpack.c.b16 %v162, %v161
    %v211 = vunpack.c.l.b16 %v83
    %v212 = vunpack.c.l.b16 %v84
    %v213 = vunpack.c.l.b16 %v85
    %v214 = vunpack.c.l.b16 %v86
    %v215 = vunpack.c.l.b16 %v87
    %v216 = vunpack.c.l.b16 %v88
    %v217 = vunpack.c.l.b16 %v89
    %v218 = vunpack.c.l.b16 %v90
    %v219 = vunpack.c.l.b16 %v91
    %v220 = vunpack.c.l.b16 %v92
    %v221 = vunpack.c.l.b16 %v93
    %v222 = vunpack.c.l.b16 %v94
    %v223 = vunpack.c.l.b16 %v95
    %v224 = vunpack.c.l.b16 %v96
    %v225 = vunpack.c.l.b16 %v97
    %v226 = vunpack.c.l.b16 %v98
    %v227 = vpack.c.b16 %v212, %v211
    %v228 = vpack.c.b16 %v214, %v213
    %v229 = vpack.c.b16 %v216, %v215
    %v230 = vpack.c.b16 %v218, %v217
    %v231 = vpack.c.b16 %v220, %v219
    %v232 = vpack.c.b16 %v222, %v221
    %v233 = vpack.c.b16 %v224, %v223
    %v234 = vpack.c.b16 %v226, %v225
    %243 = vmatpush.bf16.msra.mxu0 %v234
    %244 = vmatpush.bf16.msra.mxu0 %v233
    %245 = vmatpush.bf16.msra.mxu0 %v232
    %246 = vmatpush.bf16.msra.mxu0 %v231
    %247 = vmatpush.bf16.msra.mxu0 %v230
    %248 = vmatpush.bf16.msra.mxu0 %v229
    %249 = vmatpush.bf16.msra.mxu0 %v228
    %250 = vmatpush.bf16.msra.mxu0 %v227
    %251 = vmatmul.bf16.gmra.mxu0 %v163
    %v252 = vpop.f32.mrf.mxu0
    %v253 = vadd.f32 0.0, %v252
    %v254 = vpop.f32.mrf.mxu0
    %v255 = vadd.f32 0.0, %v254
    %256 = vmatmul.bf16.gmra.mxu0 %v164
    %v257 = vpop.f32.mrf.mxu0
    %v258 = vadd.f32 0.0, %v257
    %v259 = vpop.f32.mrf.mxu0
    %v260 = vadd.f32 0.0, %v259
    %261 = vmatmul.bf16.gmra.mxu0 %v165
    %v262 = vpop.f32.mrf.mxu0
    %v263 = vadd.f32 0.0, %v262
    %v264 = vpop.f32.mrf.mxu0
    %v265 = vadd.f32 0.0, %v264
    %266 = vmatmul.bf16.gmra.mxu0 %v166
    %v267 = vpop.f32.mrf.mxu0
    %v268 = vadd.f32 0.0, %v267
    %v269 = vpop.f32.mrf.mxu0
    %v270 = vadd.f32 0.0, %v269
    %271 = vmatmul.bf16.gmra.mxu0 %v167
    %v272 = vpop.f32.mrf.mxu0
    %v273 = vadd.f32 0.0, %v272
    %v274 = vpop.f32.mrf.mxu0
    %v275 = vadd.f32 0.0, %v274
    %276 = vmatmul.bf16.gmra.mxu0 %v168
    %v277 = vpop.f32.mrf.mxu0
    %v278 = vadd.f32 0.0, %v277
    %v279 = vpop.f32.mrf.mxu0
    %v280 = vadd.f32 0.0, %v279
    %281 = vmatmul.bf16.gmra.mxu0 %v169
    %v282 = vpop.f32.mrf.mxu0
    %v283 = vadd.f32 0.0, %v282
    %v284 = vpop.f32.mrf.mxu0
    %v285 = vadd.f32 0.0, %v284
    %286 = vmatmul.bf16.gmra.mxu0 %v170
    %v287 = vpop.f32.mrf.mxu0
    %v288 = vadd.f32 0.0, %v287
    %v289 = vpop.f32.mrf.mxu0
    %v290 = vadd.f32 0.0, %v289
    %291 = vmatmul.bf16.gmra.mxu0 %v171
    %v292 = vpop.f32.mrf.mxu0
    %v293 = vadd.f32 0.0, %v292
    %v294 = vpop.f32.mrf.mxu0
    %v295 = vadd.f32 0.0, %v294
    %296 = vmatmul.bf16.gmra.mxu0 %v172
    %v297 = vpop.f32.mrf.mxu0
    %v298 = vadd.f32 0.0, %v297
    %v299 = vpop.f32.mrf.mxu0
    %v300 = vadd.f32 0.0, %v299
    %301 = vmatmul.bf16.gmra.mxu0 %v173
    %v302 = vpop.f32.mrf.mxu0
    %v303 = vadd.f32 0.0, %v302
    %v304 = vpop.f32.mrf.mxu0
    %v305 = vadd.f32 0.0, %v304
    %306 = vmatmul.bf16.gmra.mxu0 %v174
    %v307 = vpop.f32.mrf.mxu0
    %v308 = vadd.f32 0.0, %v307
    %v309 = vpop.f32.mrf.mxu0
    %v310 = vadd.f32 0.0, %v309
    %311 = vmatmul.bf16.gmra.mxu0 %v175
    %v312 = vpop.f32.mrf.mxu0
    %v313 = vadd.f32 0.0, %v312
    %v314 = vpop.f32.mrf.mxu0
    %v315 = vadd.f32 0.0, %v314
    %316 = vmatmul.bf16.gmra.mxu0 %v176
    %v317 = vpop.f32.mrf.mxu0
    %v318 = vadd.f32 0.0, %v317
    %v319 = vpop.f32.mrf.mxu0
    %v320 = vadd.f32 0.0, %v319
    %321 = vmatmul.bf16.gmra.mxu0 %v177
    %v322 = vpop.f32.mrf.mxu0
    %v323 = vadd.f32 0.0, %v322
    %v324 = vpop.f32.mrf.mxu0
    %v325 = vadd.f32 0.0, %v324
    %326 = vmatmul.bf16.gmra.mxu0 %v178
    %v327 = vpop.f32.mrf.mxu0
    %v328 = vadd.f32 0.0, %v327
    %v329 = vpop.f32.mrf.mxu0
    %v330 = vadd.f32 0.0, %v329
    %331 = vdwg.mxu0
    %v332 = vmax.f32 %v253, 0.0
    %v333 = vmax.f32 %v255, 0.0
    %v334 = vmax.f32 %v258, 0.0
    %v335 = vmax.f32 %v260, 0.0
    %v336 = vmax.f32 %v263, 0.0
    %v337 = vmax.f32 %v265, 0.0
    %v338 = vmax.f32 %v268, 0.0
    %v339 = vmax.f32 %v270, 0.0
    %v340 = vmax.f32 %v273, 0.0
    %v341 = vmax.f32 %v275, 0.0
    %v342 = vmax.f32 %v278, 0.0
    %v343 = vmax.f32 %v280, 0.0
    %v344 = vmax.f32 %v283, 0.0
    %v345 = vmax.f32 %v285, 0.0
    %v346 = vmax.f32 %v288, 0.0
    %v347 = vmax.f32 %v290, 0.0
    %v348 = vmax.f32 %v293, 0.0
    %v349 = vmax.f32 %v295, 0.0
    %v350 = vmax.f32 %v298, 0.0
    %v351 = vmax.f32 %v300, 0.0
    %v352 = vmax.f32 %v303, 0.0
    %v353 = vmax.f32 %v305, 0.0
    %v354 = vmax.f32 %v308, 0.0
    %v355 = vmax.f32 %v310, 0.0
    %v356 = vmax.f32 %v313, 0.0
    %v357 = vmax.f32 %v315, 0.0
    %v358 = vmax.f32 %v318, 0.0
    %v359 = vmax.f32 %v320, 0.0
    %v360 = vmax.f32 %v323, 0.0
    %v361 = vmax.f32 %v325, 0.0
    %v362 = vmax.f32 %v328, 0.0
    %v363 = vmax.f32 %v330, 0.0
    %v364 = vpack.c.bf16 %v333, %v332
    %v365 = vpack.c.bf16 %v335, %v334
    %v366 = vpack.c.bf16 %v337, %v336
    %v367 = vpack.c.bf16 %v339, %v338
    %v368 = vpack.c.bf16 %v341, %v340
    %v369 = vpack.c.bf16 %v343, %v342
    %v370 = vpack.c.bf16 %v345, %v344
    %v371 = vpack.c.bf16 %v347, %v346
    %v372 = vpack.c.bf16 %v349, %v348
    %v373 = vpack.c.bf16 %v351, %v350
    %v374 = vpack.c.bf16 %v353, %v352
    %v375 = vpack.c.bf16 %v355, %v354
    %v376 = vpack.c.bf16 %v357, %v356
    %v377 = vpack.c.bf16 %v359, %v358
    %v378 = vpack.c.bf16 %v361, %v360
    %v379 = vpack.c.bf16 %v363, %v362
    %v380 = vld [vmem:[%s2] sm:$0x3]
    %s381 = sld [smem:[#allocation2]]
    %v382 = vstv %s381
    %384 = vst [vmem:[#allocation1] ss:$9 sm:$0xff] %v380
    %v385 = vld [vmem:[#allocation1] sm:$0xff]
    %v386 = vld [vmem:[#allocation1 + $0x9] sm:$0xff]
    %389 = vmatpush.bf16.msra.mxu0 %v371
    %390 = vmatpush.bf16.msra.mxu0 %v370
    %391 = vmatpush.bf16.msra.mxu0 %v369
    %392 = vmatpush.bf16.msra.mxu0 %v368
    %393 = vmatpush.bf16.msra.mxu0 %v367
    %394 = vmatpush.bf16.msra.mxu0 %v366
    %395 = vmatpush.bf16.msra.mxu0 %v365
    %396 = vmatpush.bf16.msra.mxu0 %v364
    %397 = vmatmul.bf16.gmra.mxu0 %v385
    %v398 = vpop.f32.mrf.mxu0
    %v399 = vadd.f32 %v382, %v398
    %v400 = vpop.f32.mrf.mxu0
    %401 = vdwg.mxu0
    %402 = vmatpush.bf16.msra.mxu0 %v379
    %403 = vmatpush.bf16.msra.mxu0 %v378
    %404 = vmatpush.bf16.msra.mxu0 %v377
    %405 = vmatpush.bf16.msra.mxu0 %v376
    %406 = vmatpush.bf16.msra.mxu0 %v375
    %407 = vmatpush.bf16.msra.mxu0 %v374
    %408 = vmatpush.bf16.msra.mxu0 %v373
    %409 = vmatpush.bf16.msra.mxu0 %v372
    %410 = vmatmul.bf16.gmra.mxu0 %v386
    %v411 = vpop.f32.mrf.mxu0
    %v412 = vadd.f32 %v399, %v411
    %v413 = vpop.f32.mrf.mxu0
    %414 = vdwg.mxu0
    %415 = vst [vmem:[#allocation8] sm:$0x1] %v412
    // Predicated region
    $region26: #{tpu_custom_call.1} parent=1 // pred_check
      _
    $region27: #{tpu_custom_call.1} parent=1 // pred_check_branch
      %417 = sbr.rel (0) target = $region29
    $region28: #{tpu_custom_call.1} parent=1 // pred_region
      %419 = vsyncadd [#allocation5], 0
      %s421 = sshll.u32 [#allocation8], 4
      %s422 = int_to_ptr.vmem [resolvable:$true] %s421
      %s423 = sshll.u32 %s4, 4
      %s424 = int_to_ptr.hbm [resolvable:$true] %s423
      %426 = dma.vmem_to_hbm [thread:$0]  %s422, 16, %s424, [#allocation5]
    $region29: #{tpu_custom_call.1} parent=1 // pred_fallthru
      _
    // Predicated region
    $region30: #{tpu_custom_call.1} parent=1 // pred_check
      _
    $region31: #{tpu_custom_call.1} parent=1 // pred_check_branch
      %428 = sbr.rel (0) target = $region33
    $region32: #{tpu_custom_call.1} parent=1 // pred_region
      %430 = dma.done [#allocation5], 16
    $region33: #{tpu_custom_call.1} parent=1 // pred_fallthru
      _
    %431 = vsyncpa [#allocation4], 1
    %432 = vsyncpa [#allocation7], 1
    %433 = vsyncpa [#allocation5], 1

</llo_original>
